<compile_context>
chip_gen: v6e
topology: v6e:2x2x1
jax: 0.10.0
libtpu: 0.0.40
codegen_flags: <defaults>
</compile_context>

<pallas_src>
from functools import partial

import jax
import jax.numpy as jnp
from jax import lax
from jax.experimental import pallas as pl
from jax.experimental.pallas import tpu as pltpu

LANE = 128  # TPU lane width


def _round_up(n, m):
    return ((n + m - 1) // m) * m


def _pick_tm(m_total):
    """Largest MXU-friendly M tile that still yields >=2 grid steps (v7x: 2 TCs)."""
    for tm in (512, 256, 128, 64, 32, 16, 8):
        if m_total >= 2 * tm:
            return tm
    return 8


def _matmul_bias_relu_kernel(p_ref, w_ref, b_ref, o_ref):
    # p_ref: (TM, K_pad)     im2col patches (lanes = fused contraction dim)
    # w_ref: (K_pad, OC_pad) fused per-tap weights (zero-padded)
    # b_ref: (1, OC_pad)     bias (zero-padded)
    # o_ref: (TM, OC_pad)    relu(patches @ weights + bias), lane-dense store
    acc = jnp.dot(p_ref[...], w_ref[...], preferred_element_type=jnp.float32)
    acc = acc + b_ref[...]
    o_ref[...] = jnp.maximum(acc, 0.0).astype(o_ref.dtype)


def deep_conv_net_forward(x, w_fused, bias_padded, out_channels):
    """x: [B, D, D, C] (as handed to the PyTorch forward).

    Returns [B, D*D, out_channels] with out_channels == 3 * num_conv_channels.
    """
    B, D1, D2, C = x.shape
    K = 5
    pad = (K - 1) // 2
    k_raw = K * K * C
    k_pad, oc_pad = w_fused.shape

    # --- im2col in the wrapper: lane-aligned (M, K_pad) patch matrix. ----------
    # Piece order (a, b) = (shift along dim1, shift along dim2) matches the
    # (kw, kh)-major fused weight layout built in make_params.
    x_padded = jnp.pad(x, ((0, 0), (pad, pad), (pad, pad), (0, 0)))
    pieces = [x_padded[:, a:a + D1, b:b + D2, :]
              for a in range(K) for b in range(K)]
    patches = jnp.concatenate(pieces, axis=-1).reshape(B * D1 * D2, k_raw)
    if k_pad > k_raw:
        patches = jnp.pad(patches, ((0, 0), (0, k_pad - k_raw)))

    m_total = B * D1 * D2          # batch folded into the matmul M dimension
    tm = _pick_tm(m_total)
    m_pad = _round_up(m_total, tm)
    if m_pad > m_total:
        patches = jnp.pad(patches, ((0, m_pad - m_total), (0, 0)))

    out = pl.pallas_call(
        _matmul_bias_relu_kernel,
        out_shape=jax.ShapeDtypeStruct((m_pad, oc_pad), x.dtype),
        grid=(m_pad // tm,),
        in_specs=[
            pl.BlockSpec((tm, k_pad), lambda m: (m, 0)),
            pl.BlockSpec((k_pad, oc_pad), lambda m: (0, 0)),
            pl.BlockSpec((1, oc_pad), lambda m: (0, 0)),
        ],
        out_specs=pl.BlockSpec((tm, oc_pad), lambda m: (m, 0)),
        compiler_params=pltpu.CompilerParams(
            dimension_semantics=("parallel",)),
    )(patches, w_fused, bias_padded)

    # Width-major flatten is already the natural row-major order (tap axes were
    # swapped in the fused weights), so only slice off the zero padding.
    return out[:m_total, :out_channels].reshape(B, D1 * D2, out_channels)


def make_params(key, num_channels, num_conv_channels):
    """Synthetic nn.Conv2d-shaped params + the fused/padded form for the kernel."""
    C, NC = num_channels, num_conv_channels
    K = 5
    k1, k2, k3, kb1, kb2, kb3 = jax.random.split(key, 6)
    w1 = 0.1 * jax.random.normal(k1, (NC, C, 1, 1), jnp.float32)   # OIHW
    w2 = 0.1 * jax.random.normal(k2, (NC, C, 3, 3), jnp.float32)
    w3 = 0.1 * jax.random.normal(k3, (NC, C, 5, 5), jnp.float32)
    b1 = 0.1 * jax.random.normal(kb1, (NC,), jnp.float32)
    b2 = 0.1 * jax.random.normal(kb2, (NC,), jnp.float32)
    b3 = 0.1 * jax.random.normal(kb3, (NC,), jnp.float32)
    torch_params = (w1, b1, w2, b2, w3, b3)

    # Embed 1x1 / 3x3 into a common 5x5 frame (zero taps are exact no-ops).
    w1_5 = jnp.zeros((NC, C, K, K), jnp.float32).at[:, :, 2:3, 2:3].set(w1)
    w2_5 = jnp.zeros((NC, C, K, K), jnp.float32).at[:, :, 1:4, 1:4].set(w2)
    w_all = jnp.concatenate([w1_5, w2_5, w3], axis=0)     # [3NC, C, 5, 5] OIHW
    bias = jnp.concatenate([b1, b2, b3], axis=0)          # [3NC]
    oc = 3 * NC

    # Fused matmul weights: tap axes (kw, kh) -> fused K index (kw*5+kh)*C + c,
    # matching the wrapper's im2col piece order and making the PyTorch
    # transpose(1,3)+reshape at the end a plain reshape.
    w_fused = jnp.transpose(w_all, (3, 2, 1, 0)).reshape(K * K * C, oc)
    k_pad = _round_up(K * K * C, LANE)
    oc_pad = _round_up(oc, LANE)
    w_fused = jnp.pad(w_fused, ((0, k_pad - K * K * C), (0, oc_pad - oc)))
    bias_padded = jnp.pad(bias, (0, oc_pad - oc)).reshape(1, oc_pad)
    return torch_params, w_fused, bias_padded, oc


def _reference(x, torch_params):
    """Pure-JAX mirror of the PyTorch forward (three NCHW convs)."""
    w1, b1, w2, b2, w3, b3 = torch_params
    y = jnp.transpose(x, (0, 3, 2, 1))                     # == torch transpose(1, 3)
    dn = ("NCHW", "OIHW", "NCHW")
    prec = lax.Precision.HIGHEST
    c1 = lax.conv_general_dilated(y, w1, (1, 1), ((0, 0), (0, 0)),
                                  dimension_numbers=dn, precision=prec)
    c2 = lax.conv_general_dilated(y, w2, (1, 1), ((1, 1), (1, 1)),
                                  dimension_numbers=dn, precision=prec)
    c3 = lax.conv_general_dilated(y, w3, (1, 1), ((2, 2), (2, 2)),
                                  dimension_numbers=dn, precision=prec)
    c1 = c1 + b1[None, :, None, None]
    c2 = c2 + b2[None, :, None, None]
    c3 = c3 + b3[None, :, None, None]
    feat = jnp.maximum(jnp.concatenate([c1, c2, c3], axis=1), 0.0)
    bsz, oc, h, w = feat.shape
    z = jnp.transpose(feat, (0, 3, 2, 1))                  # == torch transpose(1, 3)
    return z.reshape(bsz, w * h, oc)


if __name__ == "__main__":
    B, IMG_W, C, NC = 2, 8, 4, 8     # batch, image width, image channels, conv channels
    key = jax.random.PRNGKey(0)
    kx, kp = jax.random.split(key)
    x = jax.random.normal(kx, (B, IMG_W, IMG_W, C), jnp.float32)
    torch_params, w_fused, bias_padded, OC = make_params(kp, C, NC)

    fwd = jax.jit(partial(deep_conv_net_forward, out_channels=OC))
    out = fwd(x, w_fused, bias_padded)
    out = jax.block_until_ready(out)

    assert out.shape == (B, IMG_W * IMG_W, OC), out.shape
    ref = _reference(x, torch_params)
    max_err = float(jnp.max(jnp.abs(out - ref)))
    assert jnp.allclose(out, ref, atol=1e-4, rtol=1e-4), f"mismatch vs reference: {max_err}"

    print("KERNEL_OK")
</pallas_src>

<mosaic_0001>
module attributes {stable_mosaic.version = 11 : i64} {
  func.func @_matmul_bias_relu_kernel(%arg0: i32, %arg1: memref<64x128xf32, #tpu.memory_space<vmem>>, %arg2: memref<128x128xf32, #tpu.memory_space<vmem>>, %arg3: memref<1x128xf32, #tpu.memory_space<vmem>>, %arg4: memref<64x128xf32, #tpu.memory_space<vmem>>) attributes {dimension_semantics = [#tpu.dimension_semantics<parallel>], iteration_bounds = array<i64: 2>, scalar_prefetch = 0 : i64, scratch_operands = 0 : i64, tpu.core_type = #tpu.core_type<tc>, window_params = [{transform_indices = @transform_0, window_bounds = array<i64: 64, 128>}, {pipeline_mode = #tpu.pipeline_mode<synchronous>, transform_indices = @transform_1, window_bounds = array<i64: 128, 128>}, {pipeline_mode = #tpu.pipeline_mode<synchronous>, transform_indices = @transform_2, window_bounds = array<i64: 1, 128>}, {transform_indices = @transform_3, window_bounds = array<i64: 64, 128>}]} {
    %c0 = arith.constant 0 : index
    %c0_0 = arith.constant 0 : index
    %0 = vector.load %arg1[%c0, %c0_0] : memref<64x128xf32, #tpu.memory_space<vmem>>, vector<64x128xf32>
    %c0_1 = arith.constant 0 : index
    %c0_2 = arith.constant 0 : index
    %1 = vector.load %arg2[%c0_1, %c0_2] : memref<128x128xf32, #tpu.memory_space<vmem>>, vector<128x128xf32>
    %cst = arith.constant dense<0.000000e+00> : vector<64x128xf32>
    %2 = tpu.matmul %0, %1, %cst {dimension_numbers = #tpu.dot_dimension_numbers<[1], [0], [0], [1], [0, 0, 1, 1], [], []>} : vector<64x128xf32>, vector<128x128xf32>, vector<64x128xf32> -> vector<64x128xf32>
    %c0_3 = arith.constant 0 : index
    %c0_4 = arith.constant 0 : index
    %3 = vector.load %arg3[%c0_3, %c0_4] : memref<1x128xf32, #tpu.memory_space<vmem>>, vector<1x128xf32>
    %4 = vector.broadcast %3 : vector<1x128xf32> to vector<64x128xf32>
    %5 = arith.addf %2, %4 : vector<64x128xf32>
    %cst_5 = arith.constant 0.000000e+00 : f32
    %6 = vector.broadcast %cst_5 : f32 to vector<64x128xf32>
    %7 = arith.maximumf %5, %6 : vector<64x128xf32>
    %c0_6 = arith.constant 0 : index
    %c0_7 = arith.constant 0 : index
    %8 = vector.load %arg4[%c0_6, %c0_7] : memref<64x128xf32, #tpu.memory_space<vmem>>, vector<64x128xf32>
    tpu.vector_store %arg4[%c0_6, %c0_7], %7 {strides = array<i32>} : memref<64x128xf32, #tpu.memory_space<vmem>>, vector<64x128xf32>,
    return
  }
  func.func @transform_0(%arg0: i32) -> (i32, i32) {
    %c0_i32 = arith.constant 0 : i32
    %c0_i32_0 = arith.constant 0 : i32
    return %arg0, %c0_i32 : i32, i32
  }
  func.func @transform_1(%arg0: i32) -> (i32, i32) {
    %c0_i32 = arith.constant 0 : i32
    %c0_i32_0 = arith.constant 0 : i32
    %c0_i32_1 = arith.constant 0 : i32
    return %c0_i32, %c0_i32_0 : i32, i32
  }
  func.func @transform_2(%arg0: i32) -> (i32, i32) {
    %c0_i32 = arith.constant 0 : i32
    %c0_i32_0 = arith.constant 0 : i32
    %c0_i32_1 = arith.constant 0 : i32
    return %c0_i32, %c0_i32_0 : i32, i32
  }
  func.func @transform_3(%arg0: i32) -> (i32, i32) {
    %c0_i32 = arith.constant 0 : i32
    %c0_i32_0 = arith.constant 0 : i32
    return %arg0, %c0_i32 : i32, i32
  }
}

</mosaic_0001>

<llo_original>
// kernel: deep_conv_net_forward.1
$region0: #{deep_conv_net_forward.1}
  #allocation0 [shape = 'u32[]', space=smem, size = 0x4, offset = 0x4, fixed_abs, tag = 'smem constant byte address 0x4 - core index']
  #allocation1 [shape = 'u32[144,128]{1,0:T(1,128)}', space=vmem, size = 0x12000, scoped, tag = 'internal scratch']
  %s0 = inlined_call_operand.vmem [shape: f32[128,128], index: 0, kind: input, shape index: {}]
  %s1 = inlined_call_operand.vmem [shape: f32[128,128], index: 1, kind: input, shape index: {}]
  %s2 = inlined_call_operand.vmem [shape: f32[1,128], index: 2, kind: input, shape index: {}]
  %s3 = inlined_call_operand.vmem [shape: f32[128,128], index: 3, kind: output, shape index: {}]
  %s4 = sld [smem:[#allocation0]]
  $region45: #{deep_conv_net_forward.1} parent=0
    _
  %s6 = ssub.s32 1, %s4
  %s7 = scalar_select 0, %s6, %s4
  loop: start=0, step=1, limit=4
  $region2: #{deep_conv_net_forward.1} parent=0 // loop_pre_header
    _
  $region3: #{deep_conv_net_forward.1} parent=0 // loop_header
    %s9 = sphi 0, %s13
    %p10 = scmp.ge.s32.totalorder %s9, 4
    %s19 = sphi 0, %s21
    %s22 = sphi 0, %s19
    %s23 = sphi 0, %s22
    %s39 = sphi 0, %s23
    %s43 = sphi 0, %s43
    %s45 = sphi 0, %s43
    %s46 = sphi 0, %s45
    %s60 = sphi 0, %s46
    %s64 = sphi 0, %s64
    %s66 = sphi 0, %s64
    %s67 = sphi 0, %s66
    %s81 = sphi 0, %s67
    %s87 = sphi 0, %s89
    %s90 = sphi 0, %s87
    %s91 = sphi 0, %s90
    %s107 = sphi 0, %s91
  $region4: #{deep_conv_net_forward.1} parent=0 // loop_header_branch
    %12 = sbr.rel (%p10) target = $region8
  $region5: #{deep_conv_net_forward.1} parent=0 // loop_body
    %s14 = ssub.s32 %s9, 1
    %s15 = ssub.s32 %s9, 2
    %s16 = sadd.s32 %s9, 1
    %s17 = ssub.s32 %s9, %s16
    %p18 = scmp.eq.s32.totalorder %s17, 0
    %s20 = sadd.s32 %s19, 1
    %s21 = scalar_select %p18, %s19, %s20
    %p24 = pneg %p18
    %p25 = scmp.eq.s32.totalorder %s9, 1
    %p26 = por %p24, %p25
    %p27 = scmp.ne.s32.totalorder %s19, %s22
    %p28 = scmp.eq.s32.totalorder %s9, 0
    %p29 = por %p27, %p28
    %p30 = scmp.ne.s32.totalorder %s19, %s22
    %p31 = scmp.eq.s32.totalorder %s14, 1
    %p32 = por %p30, %p31
    %p33 = scmp.ne.s32.totalorder %s22, %s23
    %p34 = scmp.eq.s32.totalorder %s14, 0
    %p35 = por %p33, %p34
    %p36 = scmp.ne.s32.totalorder %s22, %s23
    %p37 = scmp.eq.s32.totalorder %s15, 1
    %p38 = por %p36, %p37
    %p40 = scmp.ne.s32.totalorder %s23, %s39
    %p41 = scmp.eq.s32.totalorder %s15, 0
    %p42 = por %p40, %p41
    %s44 = sadd.s32 %s43, 1
    %p47 = scmp.eq.s32.totalorder %s9, 1
    %p48 = scmp.ne.s32.totalorder %s43, %s45
    %p49 = scmp.eq.s32.totalorder %s9, 0
    %p50 = por %p48, %p49
    %p51 = scmp.ne.s32.totalorder %s43, %s45
    %p52 = scmp.eq.s32.totalorder %s14, 1
    %p53 = por %p51, %p52
    %p54 = scmp.ne.s32.totalorder %s45, %s46
    %p55 = scmp.eq.s32.totalorder %s14, 0
    %p56 = por %p54, %p55
    %p57 = scmp.ne.s32.totalorder %s45, %s46
    %p58 = scmp.eq.s32.totalorder %s15, 1
    %p59 = por %p57, %p58
    %p61 = scmp.ne.s32.totalorder %s46, %s60
    %p62 = scmp.eq.s32.totalorder %s15, 0
    %p63 = por %p61, %p62
    %s65 = sadd.s32 %s64, 1
    %p68 = scmp.eq.s32.totalorder %s9, 1
    %p69 = scmp.ne.s32.totalorder %s64, %s66
    %p70 = scmp.eq.s32.totalorder %s9, 0
    %p71 = por %p69, %p70
    %p72 = scmp.ne.s32.totalorder %s64, %s66
    %p73 = scmp.eq.s32.totalorder %s14, 1
    %p74 = por %p72, %p73
    %p75 = scmp.ne.s32.totalorder %s66, %s67
    %p76 = scmp.eq.s32.totalorder %s14, 0
    %p77 = por %p75, %p76
    %p78 = scmp.ne.s32.totalorder %s66, %s67
    %p79 = scmp.eq.s32.totalorder %s15, 1
    %p80 = por %p78, %p79
    %p82 = scmp.ne.s32.totalorder %s67, %s81
    %p83 = scmp.eq.s32.totalorder %s15, 0
    %p84 = por %p82, %p83
    %s85 = ssub.s32 %s9, %s16
    %p86 = scmp.eq.s32.totalorder %s85, 0
    %s88 = sadd.s32 %s87, 1
    %s89 = scalar_select %p86, %s87, %s88
    %p92 = pneg %p86
    %p93 = scmp.eq.s32.totalorder %s9, 1
    %p94 = por %p92, %p93
    %p95 = scmp.ne.s32.totalorder %s87, %s90
    %p96 = scmp.eq.s32.totalorder %s9, 0
    %p97 = por %p95, %p96
    %p98 = scmp.ne.s32.totalorder %s87, %s90
    %p99 = scmp.eq.s32.totalorder %s14, 1
    %p100 = por %p98, %p99
    %p101 = scmp.ne.s32.totalorder %s90, %s91
    %p102 = scmp.eq.s32.totalorder %s14, 0
    %p103 = por %p101, %p102
    %p104 = scmp.ne.s32.totalorder %s90, %s91
    %p105 = scmp.eq.s32.totalorder %s15, 1
    %p106 = por %p104, %p105
    %p108 = scmp.ne.s32.totalorder %s91, %s107
    %p109 = scmp.eq.s32.totalorder %s15, 0
    %p110 = por %p108, %p109
    %p111 = scmp.le.s32.totalorder 1, %s9
    %p112 = scmp.lt.s32.totalorder %s9, 3
    %p113 = pnand %p111, %p112
    %p114 = pneg %p113
    // Predicated region
    $region9: #{deep_conv_net_forward.1} parent=5 // pred_check
      _
    $region10: #{deep_conv_net_forward.1} parent=5 // pred_check_branch
      %116 = sbr.rel (%p113) target = $region12
    $region11: #{deep_conv_net_forward.1} parent=5 // pred_region
      %s117 = ssub.s32 %s9, 1
      // Predicated region
      $region13: #{deep_conv_net_forward.1} parent=11 // pred_check
        %p118 = pneg %p56
      $region14: #{deep_conv_net_forward.1} parent=11 // pred_check_branch
        %120 = sbr.rel (%p118) target = $region16
      $region15: #{deep_conv_net_forward.1} parent=11 // pred_region
        _
      $region16: #{deep_conv_net_forward.1} parent=11 // pred_fallthru
        _
      // Predicated region
      $region17: #{deep_conv_net_forward.1} parent=11 // pred_check
        %p121 = pneg %p77
      $region18: #{deep_conv_net_forward.1} parent=11 // pred_check_branch
        %123 = sbr.rel (%p121) target = $region20
      $region19: #{deep_conv_net_forward.1} parent=11 // pred_region
        _
      $region20: #{deep_conv_net_forward.1} parent=11 // pred_fallthru
        _
    $region12: #{deep_conv_net_forward.1} parent=5 // pred_fallthru
      _
    %p124 = scmp.lt.s32.totalorder %s9, 2
    // Predicated region
    $region21: #{deep_conv_net_forward.1} parent=5 // pred_check
      %p125 = pneg %p124
    $region22: #{deep_conv_net_forward.1} parent=5 // pred_check_branch
      %127 = sbr.rel (%p125) target = $region24
    $region23: #{deep_conv_net_forward.1} parent=5 // pred_region
      // Predicated region
      $region25: #{deep_conv_net_forward.1} parent=23 // pred_check
        %p128 = pneg %p29
      $region26: #{deep_conv_net_forward.1} parent=23 // pred_check_branch
        %130 = sbr.rel (%p128) target = $region28
      $region27: #{deep_conv_net_forward.1} parent=23 // pred_region
        %s131 = smul.u32 8, %s9
        %p132 = scmp.lt.s32.totalorder %s131, 15
        %s133 = scalar_select %p132, %s131, 15
        %s134 = smul.addr %s133, 8
        %s135 = scalar_lea.vmem %s0, %s134
        %s136 = smul.u32 8, %s9
      $region28: #{deep_conv_net_forward.1} parent=23 // pred_fallthru
        _
    $region24: #{deep_conv_net_forward.1} parent=5 // pred_fallthru
      _
    %p137 = scmp.le.s32.totalorder 1, %s9
    %p138 = scmp.lt.s32.totalorder %s9, 3
    %p139 = pnand %p137, %p138
    %p140 = pneg %p139
    // Predicated region
    $region29: #{deep_conv_net_forward.1} parent=5 // pred_check
      _
    $region30: #{deep_conv_net_forward.1} parent=5 // pred_check_branch
      %142 = sbr.rel (%p139) target = $region32
    $region31: #{deep_conv_net_forward.1} parent=5 // pred_region
      %s143 = ssub.s32 %s9, 1
      %s144 = smul.u32 8, %s14
      %p145 = scmp.lt.s32.totalorder %s144, 15
      %s146 = scalar_select %p145, %s144, 15
      %s147 = smul.addr %s146, 8
      %s148 = scalar_lea.vmem %s0, %s147
      %p149 = pneg %p35
      %p150 = pneg %p32
      %p151 = pneg %p56
      %p152 = pneg %p53
      %p153 = pneg %p77
      %p154 = pneg %p74
      %p155 = pneg %p103
      %p156 = pneg %p100
      %s157 = smul.u32 8, %s14
      %p158 = scmp.lt.s32.totalorder %s157, 15
      %s159 = scalar_select %p158, %s157, 15
      %s160 = smul.addr %s159, 8
      %s161 = scalar_lea.vmem %s3, %s160
      %s162 = smul.u32 8, %s14
      %p163 = scmp.lt.s32.totalorder %s162, 15
      %s164 = scalar_select %p163, %s162, 15
      %s165 = smul.addr %s164, 8
      %s166 = scalar_lea.vmem %s0, %s165
      %s167 = smul.u32 8, %s14
      %s168 = smul.u32 8, %s14
      %p169 = scmp.lt.s32.totalorder %s168, 15
      %s170 = scalar_select %p169, %s168, 15
      %s171 = smul.addr %s170, 8
      %s172 = scalar_lea.vmem %s3, %s171
      %s173 = smul.u32 8, %s14
      %v174 = vld [vmem:[%s166] sm:$0xff]
      %v175 = vld [vmem:[%s166 + $0x8] sm:$0xff]
      %v176 = vld [vmem:[%s166 + $0x10] sm:$0xff]
      %v177 = vld [vmem:[%s166 + $0x18] sm:$0xff]
      %v178 = vld [vmem:[%s166 + $0x20] sm:$0xff]
      %v179 = vld [vmem:[%s166 + $0x28] sm:$0xff]
      %v180 = vld [vmem:[%s166 + $0x30] sm:$0xff]
      %v181 = vld [vmem:[%s166 + $0x38] sm:$0xff]
      %v182 = vld [vmem:[%s1] sm:$0xff]
      %v183 = vld [vmem:[%s1 + $0x8] sm:$0xff]
      %v184 = vld [vmem:[%s1 + $0x10] sm:$0xff]
      %v185 = vld [vmem:[%s1 + $0x18] sm:$0xff]
      %v186 = vld [vmem:[%s1 + $0x20] sm:$0xff]
      %v187 = vld [vmem:[%s1 + $0x28] sm:$0xff]
      %v188 = vld [vmem:[%s1 + $0x30] sm:$0xff]
      %v189 = vld [vmem:[%s1 + $0x38] sm:$0xff]
      %v190 = vld [vmem:[%s1 + $0x40] sm:$0xff]
      %v191 = vld [vmem:[%s1 + $0x48] sm:$0xff]
      %v192 = vld [vmem:[%s1 + $0x50] sm:$0xff]
      %v193 = vld [vmem:[%s1 + $0x58] sm:$0xff]
      %v194 = vld [vmem:[%s1 + $0x60] sm:$0xff]
      %v195 = vld [vmem:[%s1 + $0x68] sm:$0xff]
      %v196 = vld [vmem:[%s1 + $0x70] sm:$0xff]
      %v197 = vld [vmem:[%s1 + $0x78] sm:$0xff]
      %v198 = vld [vmem:[%s2] sm:$0x1]
      %v200 = vlaneseq
      %v201 = vshrl.u32 %v200, 7
      %v202 = vsub.s32 0, %v201
      %v203 = vrot.slane %v198, %v202
      %205 = vmatprep.subr.mxu0 0.0
      %206 = vmatpush1.msra.mxu0 %v197
      %207 = vmatprep.subr.mxu0 0.0
      %208 = vmatpush1.msra.mxu0 %v196
      %209 = vmatprep.subr.mxu0 0.0
      %210 = vmatpush1.msra.mxu0 %v195
      %211 = vmatprep.subr.mxu0 0.0
      %212 = vmatpush1.msra.mxu0 %v194
      %213 = vmatprep.subr.mxu0 0.0
      %214 = vmatpush1.msra.mxu0 %v193
      %215 = vmatprep.subr.mxu0 0.0
      %216 = vmatpush1.msra.mxu0 %v192
      %217 = vmatprep.subr.mxu0 0.0
      %218 = vmatpush1.msra.mxu0 %v191
      %219 = vmatprep.subr.mxu0 0.0
      %220 = vmatpush1.msra.mxu0 %v190
      %221 = vmatprep.subr.mxu0 0.0
      %222 = vmatpush1.msra.mxu0 %v189
      %223 = vmatprep.subr.mxu0 0.0
      %224 = vmatpush1.msra.mxu0 %v188
      %225 = vmatprep.subr.mxu0 0.0
      %226 = vmatpush1.msra.mxu0 %v187
      %227 = vmatprep.subr.mxu0 0.0
      %228 = vmatpush1.msra.mxu0 %v186
      %229 = vmatprep.subr.mxu0 0.0
      %230 = vmatpush1.msra.mxu0 %v185
      %231 = vmatprep.subr.mxu0 0.0
      %232 = vmatpush1.msra.mxu0 %v184
      %233 = vmatprep.subr.mxu0 0.0
      %234 = vmatpush1.msra.mxu0 %v183
      %235 = vmatprep.subr.mxu0 0.0
      %236 = vmatpush1.msra.mxu0 %v182
      %237 = vmatprep.subr.mxu0 0.0
      %238 = vmatpush2.msra.mxu0 0.0
      %239 = vmatprep.subr.mxu0 0.0
      %240 = vmatpush2.msra.mxu0 0.0
      %241 = vmatprep.subr.mxu0 0.0
      %242 = vmatpush2.msra.mxu0 0.0
      %243 = vmatprep.subr.mxu0 0.0
      %244 = vmatpush2.msra.mxu0 0.0
      %245 = vmatprep.subr.mxu0 0.0
      %246 = vmatpush2.msra.mxu0 0.0
      %247 = vmatprep.subr.mxu0 0.0
      %248 = vmatpush2.msra.mxu0 0.0
      %249 = vmatprep.subr.mxu0 0.0
      %250 = vmatpush2.msra.mxu0 0.0
      %251 = vmatprep.subr.mxu0 0.0
      %252 = vmatpush2.msra.mxu0 0.0
      %253 = vmatprep.subr.mxu0 0.0
      %254 = vmatpush2.msra.mxu0 0.0
      %255 = vmatprep.subr.mxu0 0.0
      %256 = vmatpush2.msra.mxu0 0.0
      %257 = vmatprep.subr.mxu0 0.0
      %258 = vmatpush2.msra.mxu0 0.0
      %259 = vmatprep.subr.mxu0 0.0
      %260 = vmatpush2.msra.mxu0 0.0
      %261 = vmatprep.subr.mxu0 0.0
      %262 = vmatpush2.msra.mxu0 0.0
      %263 = vmatprep.subr.mxu0 0.0
      %264 = vmatpush2.msra.mxu0 0.0
      %265 = vmatprep.subr.mxu0 0.0
      %266 = vmatpush2.msra.mxu0 0.0
      %267 = vmatprep.subr.mxu0 0.0
      %268 = vmatpush2.msra.mxu0 0.0
      %269 = vmatprep.mubr.f32.mxu0 0.0
      %270 = vmatmul.mubr.f32.gmra.mxu0 %v174
      %v271 = vpop.f32.mrf.mxu0
      %v272 = vadd.f32 %v203, %v271
      %v273 = vpop.f32.mrf.mxu0
      %274 = vmatprep.mubr.f32.mxu0 0.0
      %275 = vmatmul.mubr.f32.gmra.mxu0 %v175
      %v276 = vpop.f32.mrf.mxu0
      %v277 = vadd.f32 %v203, %v276
      %v278 = vpop.f32.mrf.mxu0
      %279 = vmatprep.mubr.f32.mxu0 0.0
      %280 = vmatmul.mubr.f32.gmra.mxu0 %v176
      %v281 = vpop.f32.mrf.mxu0
      %v282 = vadd.f32 %v203, %v281
      %v283 = vpop.f32.mrf.mxu0
      %284 = vmatprep.mubr.f32.mxu0 0.0
      %285 = vmatmul.mubr.f32.gmra.mxu0 %v177
      %v286 = vpop.f32.mrf.mxu0
      %v287 = vadd.f32 %v203, %v286
      %v288 = vpop.f32.mrf.mxu0
      %289 = vmatprep.mubr.f32.mxu0 0.0
      %290 = vmatmul.mubr.f32.gmra.mxu0 %v178
      %v291 = vpop.f32.mrf.mxu0
      %v292 = vadd.f32 %v203, %v291
      %v293 = vpop.f32.mrf.mxu0
      %294 = vmatprep.mubr.f32.mxu0 0.0
      %295 = vmatmul.mubr.f32.gmra.mxu0 %v179
      %v296 = vpop.f32.mrf.mxu0
      %v297 = vadd.f32 %v203, %v296
      %v298 = vpop.f32.mrf.mxu0
      %299 = vmatprep.mubr.f32.mxu0 0.0
      %300 = vmatmul.mubr.f32.gmra.mxu0 %v180
      %v301 = vpop.f32.mrf.mxu0
      %v302 = vadd.f32 %v203, %v301
      %v303 = vpop.f32.mrf.mxu0
      %304 = vmatprep.mubr.f32.mxu0 0.0
      %305 = vmatmul.mubr.f32.gmra.mxu0 %v181
      %v306 = vpop.f32.mrf.mxu0
      %v307 = vadd.f32 %v203, %v306
      %v308 = vpop.f32.mrf.mxu0
      %309 = vdwg.mxu0
      %v310 = vmax.f32 %v272, 0.0
      %v311 = vmax.f32 %v277, 0.0
      %v312 = vmax.f32 %v282, 0.0
      %v313 = vmax.f32 %v287, 0.0
      %v314 = vmax.f32 %v292, 0.0
      %v315 = vmax.f32 %v297, 0.0
      %v316 = vmax.f32 %v302, 0.0
      %v317 = vmax.f32 %v307, 0.0
      %318 = vst [vmem:[%s172] sm:$0xff] %v310
      %319 = vst [vmem:[%s172 + $0x8] sm:$0xff] %v311
      %320 = vst [vmem:[%s172 + $0x10] sm:$0xff] %v312
      %321 = vst [vmem:[%s172 + $0x18] sm:$0xff] %v313
      %322 = vst [vmem:[%s172 + $0x20] sm:$0xff] %v314
      %323 = vst [vmem:[%s172 + $0x28] sm:$0xff] %v315
      %324 = vst [vmem:[%s172 + $0x30] sm:$0xff] %v316
      %325 = vst [vmem:[%s172 + $0x38] sm:$0xff] %v317
      %s326 = smul.u32 8, %s14
      %p327 = scmp.lt.s32.totalorder %s326, 15
      %s328 = scalar_select %p327, %s326, 15
      %s329 = smul.addr %s328, 8
      %s330 = scalar_lea.vmem %s3, %s329
      // Predicated region
      $region33: #{deep_conv_net_forward.1} parent=31 // pred_check
        %p331 = pneg %p100
      $region34: #{deep_conv_net_forward.1} parent=31 // pred_check_branch
        %333 = sbr.rel (%p331) target = $region36
      $region35: #{deep_conv_net_forward.1} parent=31 // pred_region
        %s334 = smul.u32 8, %s14
      $region36: #{deep_conv_net_forward.1} parent=31 // pred_fallthru
        _
    $region32: #{deep_conv_net_forward.1} parent=5 // pred_fallthru
      _
    %p335 = scmp.le.s32.totalorder 2, %s9
    // Predicated region
    $region37: #{deep_conv_net_forward.1} parent=5 // pred_check
      %p336 = pneg %p335
    $region38: #{deep_conv_net_forward.1} parent=5 // pred_check_branch
      %338 = sbr.rel (%p336) target = $region40
    $region39: #{deep_conv_net_forward.1} parent=5 // pred_region
      %s339 = ssub.s32 %s9, 2
      // Predicated region
      $region41: #{deep_conv_net_forward.1} parent=39 // pred_check
        %p340 = pneg %p106
      $region42: #{deep_conv_net_forward.1} parent=39 // pred_check_branch
        %342 = sbr.rel (%p340) target = $region44
      $region43: #{deep_conv_net_forward.1} parent=39 // pred_region
        %s343 = smul.u32 8, %s15
        %p344 = scmp.lt.s32.totalorder %s343, 15
        %s345 = scalar_select %p344, %s343, 15
        %s346 = smul.addr %s345, 8
        %s347 = scalar_lea.vmem %s3, %s346
      $region44: #{deep_conv_net_forward.1} parent=39 // pred_fallthru
        _
    $region40: #{deep_conv_net_forward.1} parent=5 // pred_fallthru
      _
  $region6: #{deep_conv_net_forward.1} parent=0 // loop_footer
    %s13 = sadd.s32 1, %s9
  $region7: #{deep_conv_net_forward.1} parent=0 // loop_footer_branch
    %8 = sbr.rel target = $region3
  $region8: #{deep_conv_net_forward.1} parent=0 // loop_exit
    _

</llo_original>
